<compile_context>
chip_gen: v6e
topology: v6e:2x2x1
jax: 0.10.0
libtpu: 0.0.40
codegen_flags: <defaults>
</compile_context>

<pallas_src>
import jax
import jax.numpy as jnp
import numpy as np
from jax import lax
from jax.experimental import pallas as pl
from jax.experimental.pallas import tpu as pltpu


def attn_scores_kernel(xq_ref, xk_ref, wq_ref, wk_ref, o_ref, k_scratch):
    i = pl.program_id(2)

    @pl.when(i == 0)
    def _():
        # K for the whole sequence: computed once per (batch, head) and kept
        # resident in VMEM scratch across the query-tile ("arbitrary") axis.
        k_scratch[...] = jnp.dot(
            xk_ref[0], wk_ref[0], preferred_element_type=jnp.float32
        ).astype(k_scratch.dtype)

    # Q for this query tile; the 1/sqrt(D) scale is pre-folded into wq.
    q = jnp.dot(
        xq_ref[0], wq_ref[0], preferred_element_type=jnp.float32
    ).astype(k_scratch.dtype)

    # Contract the head dim of both operands directly (no k.T / XLU relayout),
    # single lane-dense (tq, N) store.
    s = lax.dot_general(
        q, k_scratch[...],
        dimension_numbers=(((1,), (1,)), ((), ())),
        preferred_element_type=jnp.float32,
    )
    o_ref[0, 0] = s.astype(o_ref.dtype)


def our_attention_scores(x, wqkv, num_heads, qk_scale=None, tq=128):
    """Returns attn = (q * scale) @ k^T with shape (B, num_heads, N, N)."""
    B, N, C = x.shape
    assert C % num_heads == 0
    D = C // num_heads
    scale = qk_scale if qk_scale is not None else D ** (-0.5)
    tq = min(tq, N)
    assert N % tq == 0, "sequence length must be divisible by the query tile"

    # Pack per-head Q/K projection weights as (H, C, D); fold scale into Q.
    # V columns of the qkv weight are dead in this forward and are skipped.
    wq = (wqkv[:, :C].reshape(C, num_heads, D).transpose(1, 0, 2)
          * jnp.asarray(scale, wqkv.dtype)).astype(x.dtype)
    wk = wqkv[:, C:2 * C].reshape(C, num_heads, D).transpose(1, 0, 2).astype(x.dtype)

    bytes_el = jnp.dtype(x.dtype).itemsize
    vmem_est = (2 * tq * C * bytes_el        # xq tile (double-buffered)
                + 2 * N * C * bytes_el       # xk slab (double-buffered)
                + 2 * 2 * C * D * bytes_el   # wq + wk (double-buffered)
                + 2 * tq * N * bytes_el      # out tile (double-buffered)
                + N * D * 4)                 # K scratch
    vmem_limit = int(2 * vmem_est + (8 << 20))

    return pl.pallas_call(
        attn_scores_kernel,
        out_shape=jax.ShapeDtypeStruct((B, num_heads, N, N), x.dtype),
        grid_spec=pltpu.PrefetchScalarGridSpec(
            num_scalar_prefetch=0,
            grid=(B, num_heads, N // tq),
            in_specs=[
                pl.BlockSpec((1, tq, C), lambda b, h, i: (b, i, 0)),  # q rows
                pl.BlockSpec((1, N, C), lambda b, h, i: (b, 0, 0)),   # full seq for K
                pl.BlockSpec((1, C, D), lambda b, h, i: (h, 0, 0)),   # wq (pre-scaled)
                pl.BlockSpec((1, C, D), lambda b, h, i: (h, 0, 0)),   # wk
            ],
            out_specs=pl.BlockSpec((1, 1, tq, N), lambda b, h, i: (b, h, i, 0)),
            scratch_shapes=[pltpu.VMEM((N, D), x.dtype)],
        ),
        compiler_params=pltpu.CompilerParams(
            dimension_semantics=("parallel", "parallel", "arbitrary"),
            vmem_limit_bytes=vmem_limit,
        ),
    )(x, x, wq, wk)


def attn_scores_ref(x, wqkv, num_heads, qk_scale=None):
    """Pure-JAX mirror of the PyTorch tensor ops, for verification."""
    B, N, C = x.shape
    D = C // num_heads
    scale = qk_scale if qk_scale is not None else D ** (-0.5)
    qkv = (x @ wqkv).reshape(B, N, 3, num_heads, D).transpose(2, 0, 3, 1, 4)
    q, k = qkv[0] * scale, qkv[1]
    return jnp.einsum("bhnd,bhmd->bhnm", q, k)


if __name__ == "__main__":
    B, N, C, num_heads = 2, 256, 64, 4

    key = jax.random.PRNGKey(0)
    kx, kw = jax.random.split(key)
    x = jax.random.normal(kx, (B, N, C), jnp.float32)
    # nn.Linear(dim, 3*dim, bias=False) weight, stored pre-transposed (in, out).
    wqkv = 0.02 * jax.random.normal(kw, (C, 3 * C), jnp.float32)

    attn = our_attention_scores(x, wqkv, num_heads=num_heads, tq=128)
    attn = jax.block_until_ready(attn)

    ref = attn_scores_ref(x, wqkv, num_heads=num_heads)
    np.testing.assert_allclose(np.asarray(attn), np.asarray(ref),
                               atol=2e-4, rtol=2e-4)
    print("KERNEL_OK")
</pallas_src>

<mosaic_0001>
module attributes {stable_mosaic.version = 11 : i64} {
  func.func @attn_scores_kernel(%arg0: i32, %arg1: i32, %arg2: i32, %arg3: memref<1x128x64xf32, #tpu.memory_space<vmem>>, %arg4: memref<1x256x64xf32, #tpu.memory_space<vmem>>, %arg5: memref<1x64x16xf32, #tpu.memory_space<vmem>>, %arg6: memref<1x64x16xf32, #tpu.memory_space<vmem>>, %arg7: memref<1x1x128x256xf32, #tpu.memory_space<vmem>>, %arg8: memref<256x16xf32, #tpu.memory_space<vmem>>) attributes {dimension_semantics = [#tpu.dimension_semantics<parallel>, #tpu.dimension_semantics<parallel>, #tpu.dimension_semantics<arbitrary>], iteration_bounds = array<i64: 2, 4, 2>, scalar_prefetch = 0 : i64, scratch_operands = 1 : i64, tpu.core_type = #tpu.core_type<tc>, window_params = [{transform_indices = @transform_0, window_bounds = array<i64: 1, 128, 64>}, {transform_indices = @transform_1, window_bounds = array<i64: 1, 256, 64>}, {transform_indices = @transform_2, window_bounds = array<i64: 1, 64, 16>}, {transform_indices = @transform_3, window_bounds = array<i64: 1, 64, 16>}, {transform_indices = @transform_4, window_bounds = array<i64: 1, 1, 128, 256>}]} {
    %c0_i32 = arith.constant 0 : i32
    %0 = arith.cmpi eq, %arg2, %c0_i32 : i32
    %1 = arith.extui %0 : i1 to i32
    %c0_i32_0 = arith.constant 0 : i32
    %2 = arith.cmpi ne, %1, %c0_i32_0 : i32
    scf.if %2 {
      %c0_13 = arith.constant 0 : index
      %c0_14 = arith.constant 0 : index
      %c0_15 = arith.constant 0 : index
      %13 = vector.load %arg4[%c0_13, %c0_14, %c0_15] : memref<1x256x64xf32, #tpu.memory_space<vmem>>, vector<1x256x64xf32>
      %14 = vector.shape_cast %13 : vector<1x256x64xf32> to vector<256x64xf32>
      %c0_16 = arith.constant 0 : index
      %c0_17 = arith.constant 0 : index
      %c0_18 = arith.constant 0 : index
      %15 = vector.load %arg6[%c0_16, %c0_17, %c0_18] : memref<1x64x16xf32, #tpu.memory_space<vmem>>, vector<1x64x16xf32>
      %16 = vector.shape_cast %15 : vector<1x64x16xf32> to vector<64x16xf32>
      %cst_19 = arith.constant dense<0.000000e+00> : vector<256x16xf32>
      %17 = tpu.matmul %14, %16, %cst_19 {dimension_numbers = #tpu.dot_dimension_numbers<[1], [0], [0], [1], [0, 0, 1, 1], [], []>} : vector<256x64xf32>, vector<64x16xf32>, vector<256x16xf32> -> vector<256x16xf32>
      %c0_20 = arith.constant 0 : index
      %c0_21 = arith.constant 0 : index
      %18 = vector.load %arg8[%c0_20, %c0_21] : memref<256x16xf32, #tpu.memory_space<vmem>>, vector<256x16xf32>
      tpu.vector_store %arg8[%c0_20, %c0_21], %17 {strides = array<i32>} : memref<256x16xf32, #tpu.memory_space<vmem>>, vector<256x16xf32>,
    } else {
    }
    %c0 = arith.constant 0 : index
    %c0_1 = arith.constant 0 : index
    %c0_2 = arith.constant 0 : index
    %3 = vector.load %arg3[%c0, %c0_1, %c0_2] : memref<1x128x64xf32, #tpu.memory_space<vmem>>, vector<1x128x64xf32>
    %4 = vector.shape_cast %3 : vector<1x128x64xf32> to vector<128x64xf32>
    %c0_3 = arith.constant 0 : index
    %c0_4 = arith.constant 0 : index
    %c0_5 = arith.constant 0 : index
    %5 = vector.load %arg5[%c0_3, %c0_4, %c0_5] : memref<1x64x16xf32, #tpu.memory_space<vmem>>, vector<1x64x16xf32>
    %6 = vector.shape_cast %5 : vector<1x64x16xf32> to vector<64x16xf32>
    %cst = arith.constant dense<0.000000e+00> : vector<128x16xf32>
    %7 = tpu.matmul %4, %6, %cst {dimension_numbers = #tpu.dot_dimension_numbers<[1], [0], [0], [1], [0, 0, 1, 1], [], []>} : vector<128x64xf32>, vector<64x16xf32>, vector<128x16xf32> -> vector<128x16xf32>
    %c0_6 = arith.constant 0 : index
    %c0_7 = arith.constant 0 : index
    %8 = vector.load %arg8[%c0_6, %c0_7] : memref<256x16xf32, #tpu.memory_space<vmem>>, vector<256x16xf32>
    %cst_8 = arith.constant dense<0.000000e+00> : vector<128x256xf32>
    %9 = tpu.matmul %7, %8, %cst_8 {dimension_numbers = #tpu.dot_dimension_numbers<[1], [1], [0], [0], [0, 0, 1, 0], [], []>} : vector<128x16xf32>, vector<256x16xf32>, vector<128x256xf32> -> vector<128x256xf32>
    %c0_9 = arith.constant 0 : index
    %c0_10 = arith.constant 0 : index
    %c0_11 = arith.constant 0 : index
    %c0_12 = arith.constant 0 : index
    %10 = vector.load %arg7[%c0_9, %c0_10, %c0_11, %c0_12] : memref<1x1x128x256xf32, #tpu.memory_space<vmem>>, vector<1x1x128x256xf32>
    %11 = vector.shape_cast %10 : vector<1x1x128x256xf32> to vector<128x256xf32>
    %12 = vector.shape_cast %9 : vector<128x256xf32> to vector<1x1x128x256xf32>
    tpu.vector_store %arg7[%c0_9, %c0_10, %c0_11, %c0_12], %12 {strides = array<i32>} : memref<1x1x128x256xf32, #tpu.memory_space<vmem>>, vector<1x1x128x256xf32>,
    return
  }
  func.func @transform_0(%arg0: i32, %arg1: i32, %arg2: i32) -> (i32, i32, i32) {
    %c0_i32 = arith.constant 0 : i32
    %c0_i32_0 = arith.constant 0 : i32
    return %arg0, %arg2, %c0_i32 : i32, i32, i32
  }
  func.func @transform_1(%arg0: i32, %arg1: i32, %arg2: i32) -> (i32, i32, i32) {
    %c0_i32 = arith.constant 0 : i32
    %c0_i32_0 = arith.constant 0 : i32
    %c0_i32_1 = arith.constant 0 : i32
    return %arg0, %c0_i32, %c0_i32_0 : i32, i32, i32
  }
  func.func @transform_2(%arg0: i32, %arg1: i32, %arg2: i32) -> (i32, i32, i32) {
    %c0_i32 = arith.constant 0 : i32
    %c0_i32_0 = arith.constant 0 : i32
    %c0_i32_1 = arith.constant 0 : i32
    return %arg1, %c0_i32, %c0_i32_0 : i32, i32, i32
  }
  func.func @transform_3(%arg0: i32, %arg1: i32, %arg2: i32) -> (i32, i32, i32) {
    %c0_i32 = arith.constant 0 : i32
    %c0_i32_0 = arith.constant 0 : i32
    %c0_i32_1 = arith.constant 0 : i32
    return %arg1, %c0_i32, %c0_i32_0 : i32, i32, i32
  }
  func.func @transform_4(%arg0: i32, %arg1: i32, %arg2: i32) -> (i32, i32, i32, i32) {
    %c0_i32 = arith.constant 0 : i32
    %c0_i32_0 = arith.constant 0 : i32
    return %arg0, %arg1, %arg2, %c0_i32 : i32, i32, i32, i32
  }
}

</mosaic_0001>

<llo_original>
// kernel: tpu_custom_call.1
$region0: #{tpu_custom_call.1}
  #allocation0 [shape = 'u32[]', space=smem, size = 0x4, offset = 0x4, fixed_abs, tag = 'smem constant byte address 0x4 - core index']
  #allocation1 [shape = 'u32[144,128]{1,0:T(1,128)}', space=vmem, size = 0x12000, scoped, tag = 'internal scratch']
  #allocation2 [shape = 'f32[256,16]{1,0:T(8,128)}', space=vmem, size = 0x20000, scoped, tag = 'scratch operand']
  %s0 = inlined_call_operand.vmem [shape: f32[2,256,64], index: 0, kind: input, shape index: {}]
  %s1 = inlined_call_operand.vmem [shape: f32[2,256,64], index: 1, kind: input, shape index: {}]
  %s2 = inlined_call_operand.vmem [shape: f32[4,64,16], index: 2, kind: input, shape index: {}]
  %s3 = inlined_call_operand.vmem [shape: f32[4,64,16], index: 3, kind: input, shape index: {}]
  %s4 = inlined_call_operand.hbm [shape: f32[2,4,256,256], index: 4, kind: output, shape index: {}]
  %s5 = sld [smem:[#allocation0]]
  $region53: #{tpu_custom_call.1} parent=0
    _
  %s7 = ssub.s32 1, %s5
  %s8 = scalar_select 0, %s7, %s5
  $region1: #{tpu_custom_call.1} parent=0
    #allocation3 [shape = 'u8[262144]{0}', space=vmem, size = 0x40000, scoped, tag = 'output window, operand 0']
    #allocation4 [shape = 's32[2]{0}', space=sflag, size = 0x8, scoped, tag = 'scoped memory for tpu_custom_call.1']
    %9 = vsyncpa [#allocation4], 0
    %s10 = scalar_lea.sflag [#allocation4], 1
    %11 = vsyncpa %s10, 0
    loop: start=0, step=1, limit=18
    $region2: #{tpu_custom_call.1} parent=1 // loop_pre_header
      _
    $region3: #{tpu_custom_call.1} parent=1 // loop_header
      %s13 = sphi 0, %s17
      %p14 = scmp.ge.s32.totalorder %s13, 18
      %s20 = sphi 0, %s39
      %s21 = sphi 0, %s35
      %s22 = sphi 0, %s31
      %s23 = sphi 0, %s20
      %s24 = sphi 0, %s21
      %s25 = sphi 0, %s22
      %s26 = sphi 0, %s23
      %s27 = sphi 0, %s24
      %s28 = sphi 0, %s25
      %s44 = sphi 0, %s46
      %s47 = sphi 0, %s44
      %s48 = sphi 0, %s47
      %s64 = sphi 0, %s48
      %s70 = sphi 0, %s72
      %s73 = sphi 0, %s70
      %s74 = sphi 0, %s73
      %s90 = sphi 0, %s74
      %s96 = sphi 0, %s98
      %s99 = sphi 0, %s96
      %s100 = sphi 0, %s99
      %s116 = sphi 0, %s100
      %s122 = sphi 0, %s124
      %s125 = sphi 0, %s122
      %s126 = sphi 0, %s125
      %s142 = sphi 0, %s126
      %s152 = sphi 0, %s154
      %s155 = sphi 0, %s152
      %s156 = sphi 0, %s155
      %s172 = sphi 0, %s156
    $region4: #{tpu_custom_call.1} parent=1 // loop_header_branch
      %16 = sbr.rel (%p14) target = $region8
    $region5: #{tpu_custom_call.1} parent=1 // loop_body
      %s18 = ssub.s32 %s13, 1
      %s19 = ssub.s32 %s13, 2
      %s29 = sadd.s32 1, %s22
      %p30 = scmp.ge.s32.totalorder %s29, 2
      %s31 = scalar_select %p30, 0, %s29
      %s32 = sadd.s32 1, %s21
      %s33 = scalar_select %p30, %s32, %s21
      %p34 = scmp.ge.s32.totalorder %s33, 4
      %s35 = scalar_select %p34, 0, %s33
      %s36 = sadd.s32 1, %s20
      %s37 = scalar_select %p34, %s36, %s20
      %p38 = scmp.ge.s32.totalorder %s37, 2
      %s39 = scalar_select %p38, 0, %s37
      %s40 = ssub.s32 %s20, %s39
      %s41 = ssub.s32 %s22, %s31
      %s42 = sor.u32 %s40, %s41
      %p43 = scmp.eq.s32.totalorder %s42, 0
      %s45 = sadd.s32 %s44, 1
      %s46 = scalar_select %p43, %s44, %s45
      %p49 = pneg %p43
      %p50 = scmp.eq.s32.totalorder %s13, 15
      %p51 = por %p49, %p50
      %p52 = scmp.ne.s32.totalorder %s44, %s47
      %p53 = scmp.eq.s32.totalorder %s13, 0
      %p54 = por %p52, %p53
      %p55 = scmp.ne.s32.totalorder %s44, %s47
      %p56 = scmp.eq.s32.totalorder %s18, 15
      %p57 = por %p55, %p56
      %p58 = scmp.ne.s32.totalorder %s47, %s48
      %p59 = scmp.eq.s32.totalorder %s18, 0
      %p60 = por %p58, %p59
      %p61 = scmp.ne.s32.totalorder %s47, %s48
      %p62 = scmp.eq.s32.totalorder %s19, 15
      %p63 = por %p61, %p62
      %p65 = scmp.ne.s32.totalorder %s48, %s64
      %p66 = scmp.eq.s32.totalorder %s19, 0
      %p67 = por %p65, %p66
      %s68 = ssub.s32 %s20, %s39
      %p69 = scmp.eq.s32.totalorder %s68, 0
      %s71 = sadd.s32 %s70, 1
      %s72 = scalar_select %p69, %s70, %s71
      %p75 = pneg %p69
      %p76 = scmp.eq.s32.totalorder %s13, 15
      %p77 = por %p75, %p76
      %p78 = scmp.ne.s32.totalorder %s70, %s73
      %p79 = scmp.eq.s32.totalorder %s13, 0
      %p80 = por %p78, %p79
      %p81 = scmp.ne.s32.totalorder %s70, %s73
      %p82 = scmp.eq.s32.totalorder %s18, 15
      %p83 = por %p81, %p82
      %p84 = scmp.ne.s32.totalorder %s73, %s74
      %p85 = scmp.eq.s32.totalorder %s18, 0
      %p86 = por %p84, %p85
      %p87 = scmp.ne.s32.totalorder %s73, %s74
      %p88 = scmp.eq.s32.totalorder %s19, 15
      %p89 = por %p87, %p88
      %p91 = scmp.ne.s32.totalorder %s74, %s90
      %p92 = scmp.eq.s32.totalorder %s19, 0
      %p93 = por %p91, %p92
      %s94 = ssub.s32 %s21, %s35
      %p95 = scmp.eq.s32.totalorder %s94, 0
      %s97 = sadd.s32 %s96, 1
      %s98 = scalar_select %p95, %s96, %s97
      %p101 = pneg %p95
      %p102 = scmp.eq.s32.totalorder %s13, 15
      %p103 = por %p101, %p102
      %p104 = scmp.ne.s32.totalorder %s96, %s99
      %p105 = scmp.eq.s32.totalorder %s13, 0
      %p106 = por %p104, %p105
      %p107 = scmp.ne.s32.totalorder %s96, %s99
      %p108 = scmp.eq.s32.totalorder %s18, 15
      %p109 = por %p107, %p108
      %p110 = scmp.ne.s32.totalorder %s99, %s100
      %p111 = scmp.eq.s32.totalorder %s18, 0
      %p112 = por %p110, %p111
      %p113 = scmp.ne.s32.totalorder %s99, %s100
      %p114 = scmp.eq.s32.totalorder %s19, 15
      %p115 = por %p113, %p114
      %p117 = scmp.ne.s32.totalorder %s100, %s116
      %p118 = scmp.eq.s32.totalorder %s19, 0
      %p119 = por %p117, %p118
      %s120 = ssub.s32 %s21, %s35
      %p121 = scmp.eq.s32.totalorder %s120, 0
      %s123 = sadd.s32 %s122, 1
      %s124 = scalar_select %p121, %s122, %s123
      %p127 = pneg %p121
      %p128 = scmp.eq.s32.totalorder %s13, 15
      %p129 = por %p127, %p128
      %p130 = scmp.ne.s32.totalorder %s122, %s125
      %p131 = scmp.eq.s32.totalorder %s13, 0
      %p132 = por %p130, %p131
      %p133 = scmp.ne.s32.totalorder %s122, %s125
      %p134 = scmp.eq.s32.totalorder %s18, 15
      %p135 = por %p133, %p134
      %p136 = scmp.ne.s32.totalorder %s125, %s126
      %p137 = scmp.eq.s32.totalorder %s18, 0
      %p138 = por %p136, %p137
      %p139 = scmp.ne.s32.totalorder %s125, %s126
      %p140 = scmp.eq.s32.totalorder %s19, 15
      %p141 = por %p139, %p140
      %p143 = scmp.ne.s32.totalorder %s126, %s142
      %p144 = scmp.eq.s32.totalorder %s19, 0
      %p145 = por %p143, %p144
      %s146 = ssub.s32 %s20, %s39
      %s147 = ssub.s32 %s21, %s35
      %s148 = sor.u32 %s146, %s147
      %s149 = ssub.s32 %s22, %s31
      %s150 = sor.u32 %s148, %s149
      %p151 = scmp.eq.s32.totalorder %s150, 0
      %s153 = sadd.s32 %s152, 1
      %s154 = scalar_select %p151, %s152, %s153
      %p157 = pneg %p151
      %p158 = scmp.eq.s32.totalorder %s13, 15
      %p159 = por %p157, %p158
      %p160 = scmp.ne.s32.totalorder %s152, %s155
      %p161 = scmp.eq.s32.totalorder %s13, 0
      %p162 = por %p160, %p161
      %p163 = scmp.ne.s32.totalorder %s152, %s155
      %p164 = scmp.eq.s32.totalorder %s18, 15
      %p165 = por %p163, %p164
      %p166 = scmp.ne.s32.totalorder %s155, %s156
      %p167 = scmp.eq.s32.totalorder %s18, 0
      %p168 = por %p166, %p167
      %p169 = scmp.ne.s32.totalorder %s155, %s156
      %p170 = scmp.eq.s32.totalorder %s19, 15
      %p171 = por %p169, %p170
      %p173 = scmp.ne.s32.totalorder %s156, %s172
      %p174 = scmp.eq.s32.totalorder %s19, 0
      %p175 = por %p173, %p174
      %p176 = scmp.le.s32.totalorder 1, %s13
      %p177 = scmp.lt.s32.totalorder %s13, 17
      %p178 = pnand %p176, %p177
      %p179 = pneg %p178
      // Predicated region
      $region9: #{tpu_custom_call.1} parent=5 // pred_check
        _
      $region10: #{tpu_custom_call.1} parent=5 // pred_check_branch
        %181 = sbr.rel (%p178) target = $region12
      $region11: #{tpu_custom_call.1} parent=5 // pred_region
        %s182 = ssub.s32 %s13, 1
      $region12: #{tpu_custom_call.1} parent=5 // pred_fallthru
        _
      %p183 = scmp.lt.s32.totalorder %s13, 16
      // Predicated region
      $region13: #{tpu_custom_call.1} parent=5 // pred_check
        %p184 = pneg %p183
      $region14: #{tpu_custom_call.1} parent=5 // pred_check_branch
        %186 = sbr.rel (%p184) target = $region16
      $region15: #{tpu_custom_call.1} parent=5 // pred_region
        // Predicated region
        $region17: #{tpu_custom_call.1} parent=15 // pred_check
          %p187 = pneg %p54
        $region18: #{tpu_custom_call.1} parent=15 // pred_check_branch
          %189 = sbr.rel (%p187) target = $region20
        $region19: #{tpu_custom_call.1} parent=15 // pred_region
          %s190 = smul.u32 16, %s22
          %p191 = scmp.lt.s32.totalorder %s20, 1
          %s192 = scalar_select %p191, %s20, 1
          %p193 = scmp.lt.s32.totalorder %s190, 31
          %s194 = scalar_select %p193, %s190, 31
          %s195 = smul.addr %s192, 32
          %s196 = sadd.s32 %s194, %s195
          %s197 = smul.addr %s196, 8
          %s198 = scalar_lea.vmem %s0, %s197
          %s199 = smul.u32 16, %s22
        $region20: #{tpu_custom_call.1} parent=15 // pred_fallthru
          _
        // Predicated region
        $region21: #{tpu_custom_call.1} parent=15 // pred_check
          %p200 = pneg %p80
        $region22: #{tpu_custom_call.1} parent=15 // pred_check_branch
          %202 = sbr.rel (%p200) target = $region24
        $region23: #{tpu_custom_call.1} parent=15 // pred_region
          %p203 = scmp.lt.s32.totalorder %s20, 1
          %s204 = scalar_select %p203, %s20, 1
          %s205 = smul.addr %s204, 32
          %s206 = smul.addr %s205, 8
          %s207 = scalar_lea.vmem %s1, %s206
        $region24: #{tpu_custom_call.1} parent=15 // pred_fallthru
          _
        // Predicated region
        $region25: #{tpu_custom_call.1} parent=15 // pred_check
          %p208 = pneg %p106
        $region26: #{tpu_custom_call.1} parent=15 // pred_check_branch
          %210 = sbr.rel (%p208) target = $region28
        $region27: #{tpu_custom_call.1} parent=15 // pred_region
          %p211 = scmp.lt.s32.totalorder %s21, 3
          %s212 = scalar_select %p211, %s21, 3
          %s213 = smul.addr %s212, 8
          %s214 = smul.addr %s213, 8
          %s215 = scalar_lea.vmem %s2, %s214
        $region28: #{tpu_custom_call.1} parent=15 // pred_fallthru
          _
        // Predicated region
        $region29: #{tpu_custom_call.1} parent=15 // pred_check
          %p216 = pneg %p132
        $region30: #{tpu_custom_call.1} parent=15 // pred_check_branch
          %218 = sbr.rel (%p216) target = $region32
        $region31: #{tpu_custom_call.1} parent=15 // pred_region
          %p219 = scmp.lt.s32.totalorder %s21, 3
          %s220 = scalar_select %p219, %s21, 3
          %s221 = smul.addr %s220, 8
          %s222 = smul.addr %s221, 8
          %s223 = scalar_lea.vmem %s3, %s222
        $region32: #{tpu_custom_call.1} parent=15 // pred_fallthru
          _
      $region16: #{tpu_custom_call.1} parent=5 // pred_fallthru
        _
      %p224 = scmp.le.s32.totalorder 1, %s13
      %p225 = scmp.lt.s32.totalorder %s13, 17
      %p226 = pnand %p224, %p225
      %p227 = pneg %p226
      // Predicated region
      $region33: #{tpu_custom_call.1} parent=5 // pred_check
        _
      $region34: #{tpu_custom_call.1} parent=5 // pred_check_branch
        %229 = sbr.rel (%p226) target = $region36
      $region35: #{tpu_custom_call.1} parent=5 // pred_region
        %s230 = ssub.s32 %s13, 1
        %s231 = smul.u32 16, %s25
        %p232 = scmp.lt.s32.totalorder %s23, 1
        %s233 = scalar_select %p232, %s23, 1
        %p234 = scmp.lt.s32.totalorder %s231, 31
        %s235 = scalar_select %p234, %s231, 31
        %s236 = smul.addr %s233, 32
        %s237 = sadd.s32 %s235, %s236
        %s238 = smul.addr %s237, 8
        %s239 = scalar_lea.vmem %s0, %s238
        %p240 = pneg %p60
        %p241 = pneg %p57
        %p242 = scmp.lt.s32.totalorder %s23, 1
        %s243 = scalar_select %p242, %s23, 1
        %s244 = smul.addr %s243, 32
        %s245 = smul.addr %s244, 8
        %s246 = scalar_lea.vmem %s1, %s245
        %p247 = pneg %p86
        %p248 = pneg %p83
        %p249 = scmp.lt.s32.totalorder %s24, 3
        %s250 = scalar_select %p249, %s24, 3
        %s251 = smul.addr %s250, 8
        %s252 = smul.addr %s251, 8
        %s253 = scalar_lea.vmem %s2, %s252
        %p254 = pneg %p112
        %p255 = pneg %p109
        %p256 = scmp.lt.s32.totalorder %s24, 3
        %s257 = scalar_select %p256, %s24, 3
        %s258 = smul.addr %s257, 8
        %s259 = smul.addr %s258, 8
        %s260 = scalar_lea.vmem %s3, %s259
        %p261 = pneg %p138
        %p262 = pneg %p135
        %p263 = pneg %p168
        %p264 = pneg %p165
        %s265 = sand.u32 %s155, 1
        %s266 = scalar_lea.sflag [#allocation4], %s265
        %s267 = sand.u32 %s155, 1
        %s268 = smul.addr %s267, 256
        %s269 = scalar_lea.vmem [#allocation3], %s268
        %s270 = smul.u32 16, %s25
        %p271 = scmp.lt.s32.totalorder %s23, 1
        %s272 = scalar_select %p271, %s23, 1
        %p273 = scmp.lt.s32.totalorder %s270, 31
        %s274 = scalar_select %p273, %s270, 31
        %s275 = smul.addr %s272, 32
        %s276 = sadd.s32 %s274, %s275
        %s277 = smul.addr %s276, 8
        %s278 = scalar_lea.vmem %s0, %s277
        %s279 = smul.u32 16, %s25
        %p280 = scmp.lt.s32.totalorder %s23, 1
        %s281 = scalar_select %p280, %s23, 1
        %s282 = smul.addr %s281, 32
        %s283 = smul.addr %s282, 8
        %s284 = scalar_lea.vmem %s1, %s283
        %p285 = scmp.lt.s32.totalorder %s24, 3
        %s286 = scalar_select %p285, %s24, 3
        %s287 = smul.addr %s286, 8
        %s288 = smul.addr %s287, 8
        %s289 = scalar_lea.vmem %s2, %s288
        %p290 = scmp.lt.s32.totalorder %s24, 3
        %s291 = scalar_select %p290, %s24, 3
        %s292 = smul.addr %s291, 8
        %s293 = smul.addr %s292, 8
        %s294 = scalar_lea.vmem %s3, %s293
        %s295 = smul.u32 16, %s25
        %p296 = scmp.eq.s32.totalorder %s25, 0
        // Predicated region
        $region37: #{tpu_custom_call.1} parent=35 // pred_check
          %p297 = pneg %p296
        $region38: #{tpu_custom_call.1} parent=35 // pred_check_branch
          %299 = sbr.rel (%p297) target = $region40
        $region39: #{tpu_custom_call.1} parent=35 // pred_region
          %v300 = vld [vmem:[%s284] sm:$0xff]
          %v301 = vld [vmem:[%s284 + $0x8] sm:$0xff]
          %v302 = vld [vmem:[%s284 + $0x10] sm:$0xff]
          %v303 = vld [vmem:[%s284 + $0x18] sm:$0xff]
          %v304 = vld [vmem:[%s284 + $0x20] sm:$0xff]
          %v305 = vld [vmem:[%s284 + $0x28] sm:$0xff]
          %v306 = vld [vmem:[%s284 + $0x30] sm:$0xff]
          %v307 = vld [vmem:[%s284 + $0x38] sm:$0xff]
          %v308 = vld [vmem:[%s284 + $0x40] sm:$0xff]
          %v309 = vld [vmem:[%s284 + $0x48] sm:$0xff]
          %v310 = vld [vmem:[%s284 + $0x50] sm:$0xff]
          %v311 = vld [vmem:[%s284 + $0x58] sm:$0xff]
          %v312 = vld [vmem:[%s284 + $0x60] sm:$0xff]
          %v313 = vld [vmem:[%s284 + $0x68] sm:$0xff]
          %v314 = vld [vmem:[%s284 + $0x70] sm:$0xff]
          %v315 = vld [vmem:[%s284 + $0x78] sm:$0xff]
          %v316 = vld [vmem:[%s284 + $0x80] sm:$0xff]
          %v317 = vld [vmem:[%s284 + $0x88] sm:$0xff]
          %v318 = vld [vmem:[%s284 + $0x90] sm:$0xff]
          %v319 = vld [vmem:[%s284 + $0x98] sm:$0xff]
          %v320 = vld [vmem:[%s284 + $0xa0] sm:$0xff]
          %v321 = vld [vmem:[%s284 + $0xa8] sm:$0xff]
          %v322 = vld [vmem:[%s284 + $0xb0] sm:$0xff]
          %v323 = vld [vmem:[%s284 + $0xb8] sm:$0xff]
          %v324 = vld [vmem:[%s284 + $0xc0] sm:$0xff]
          %v325 = vld [vmem:[%s284 + $0xc8] sm:$0xff]
          %v326 = vld [vmem:[%s284 + $0xd0] sm:$0xff]
          %v327 = vld [vmem:[%s284 + $0xd8] sm:$0xff]
          %v328 = vld [vmem:[%s284 + $0xe0] sm:$0xff]
          %v329 = vld [vmem:[%s284 + $0xe8] sm:$0xff]
          %v330 = vld [vmem:[%s284 + $0xf0] sm:$0xff]
          %v331 = vld [vmem:[%s284 + $0xf8] sm:$0xff]
          %v332 = vld [vmem:[%s294] sm:$0xff]
          %v333 = vld [vmem:[%s294 + $0x8] sm:$0xff]
          %v334 = vld [vmem:[%s294 + $0x10] sm:$0xff]
          %v335 = vld [vmem:[%s294 + $0x18] sm:$0xff]
          %v336 = vld [vmem:[%s294 + $0x20] sm:$0xff]
          %v337 = vld [vmem:[%s294 + $0x28] sm:$0xff]
          %v338 = vld [vmem:[%s294 + $0x30] sm:$0xff]
          %v339 = vld [vmem:[%s294 + $0x38] sm:$0xff]
          %vm340 = vcmask 523264
          %v342 = vsel %vm340, %v300, 0
          %v345 = vsel %vm340, %v301, 0
          %v348 = vsel %vm340, %v302, 0
          %v351 = vsel %vm340, %v303, 0
          %v354 = vsel %vm340, %v304, 0
          %v357 = vsel %vm340, %v305, 0
          %v360 = vsel %vm340, %v306, 0
          %v363 = vsel %vm340, %v307, 0
          %v366 = vsel %vm340, %v308, 0
          %v369 = vsel %vm340, %v309, 0
          %v372 = vsel %vm340, %v310, 0
          %v375 = vsel %vm340, %v311, 0
          %v378 = vsel %vm340, %v312, 0
          %v381 = vsel %vm340, %v313, 0
          %v384 = vsel %vm340, %v314, 0
          %v387 = vsel %vm340, %v315, 0
          %v390 = vsel %vm340, %v316, 0
          %v393 = vsel %vm340, %v317, 0
          %v396 = vsel %vm340, %v318, 0
          %v399 = vsel %vm340, %v319, 0
          %v402 = vsel %vm340, %v320, 0
          %v405 = vsel %vm340, %v321, 0
          %v408 = vsel %vm340, %v322, 0
          %v411 = vsel %vm340, %v323, 0
          %v414 = vsel %vm340, %v324, 0
          %v417 = vsel %vm340, %v325, 0
          %v420 = vsel %vm340, %v326, 0
          %v423 = vsel %vm340, %v327, 0
          %v426 = vsel %vm340, %v328, 0
          %v429 = vsel %vm340, %v329, 0
          %v432 = vsel %vm340, %v330, 0
          %v435 = vsel %vm340, %v331, 0
          %437 = vmatprep.subr.mxu0 0.0
          %438 = vmatpush1.msra.mxu0 0.0
          %439 = vmatprep.subr.mxu0 0.0
          %440 = vmatpush1.msra.mxu0 0.0
          %441 = vmatprep.subr.mxu0 0.0
          %442 = vmatpush1.msra.mxu0 0.0
          %443 = vmatprep.subr.mxu0 0.0
          %444 = vmatpush1.msra.mxu0 0.0
          %445 = vmatprep.subr.mxu0 0.0
          %446 = vmatpush1.msra.mxu0 0.0
          %447 = vmatprep.subr.mxu0 0.0
          %448 = vmatpush1.msra.mxu0 0.0
          %449 = vmatprep.subr.mxu0 0.0
          %450 = vmatpush1.msra.mxu0 0.0
          %451 = vmatprep.subr.mxu0 0.0
          %452 = vmatpush1.msra.mxu0 0.0
          %453 = vmatprep.subr.mxu0 0.0
          %454 = vmatpush1.msra.mxu0 %v339
          %455 = vmatprep.subr.mxu0 0.0
          %456 = vmatpush1.msra.mxu0 %v338
          %457 = vmatprep.subr.mxu0 0.0
          %458 = vmatpush1.msra.mxu0 %v337
          %459 = vmatprep.subr.mxu0 0.0
          %460 = vmatpush1.msra.mxu0 %v336
          %461 = vmatprep.subr.mxu0 0.0
          %462 = vmatpush1.msra.mxu0 %v335
          %463 = vmatprep.subr.mxu0 0.0
          %464 = vmatpush1.msra.mxu0 %v334
          %465 = vmatprep.subr.mxu0 0.0
          %466 = vmatpush1.msra.mxu0 %v333
          %467 = vmatprep.subr.mxu0 0.0
          %468 = vmatpush1.msra.mxu0 %v332
          %469 = vmatprep.subr.mxu0 0.0
          %470 = vmatpush2.msra.mxu0 0.0
          %471 = vmatprep.subr.mxu0 0.0
          %472 = vmatpush2.msra.mxu0 0.0
          %473 = vmatprep.subr.mxu0 0.0
          %474 = vmatpush2.msra.mxu0 0.0
          %475 = vmatprep.subr.mxu0 0.0
          %476 = vmatpush2.msra.mxu0 0.0
          %477 = vmatprep.subr.mxu0 0.0
          %478 = vmatpush2.msra.mxu0 0.0
          %479 = vmatprep.subr.mxu0 0.0
          %480 = vmatpush2.msra.mxu0 0.0
          %481 = vmatprep.subr.mxu0 0.0
          %482 = vmatpush2.msra.mxu0 0.0
          %483 = vmatprep.subr.mxu0 0.0
          %484 = vmatpush2.msra.mxu0 0.0
          %485 = vmatprep.subr.mxu0 0.0
          %486 = vmatpush2.msra.mxu0 0.0
          %487 = vmatprep.subr.mxu0 0.0
          %488 = vmatpush2.msra.mxu0 0.0
          %489 = vmatprep.subr.mxu0 0.0
          %490 = vmatpush2.msra.mxu0 0.0
          %491 = vmatprep.subr.mxu0 0.0
          %492 = vmatpush2.msra.mxu0 0.0
          %493 = vmatprep.subr.mxu0 0.0
          %494 = vmatpush2.msra.mxu0 0.0
          %495 = vmatprep.subr.mxu0 0.0
          %496 = vmatpush2.msra.mxu0 0.0
          %497 = vmatprep.subr.mxu0 0.0
          %498 = vmatpush2.msra.mxu0 0.0
          %499 = vmatprep.subr.mxu0 0.0
          %500 = vmatpush2.msra.mxu0 0.0
          %501 = vmatprep.mubr.f32.mxu0 0.0
          %502 = vmatmul.mubr.f32.gmra.mxu0 %v342
          %v503 = vpop.f32.mrf.mxu0
          %v504 = vadd.f32 0.0, %v503
          %v505 = vpop.f32.mrf.mxu0
          %506 = vmatprep.mubr.f32.mxu0 0.0
          %507 = vmatmul.mubr.f32.gmra.mxu0 %v345
          %v508 = vpop.f32.mrf.mxu0
          %v509 = vadd.f32 0.0, %v508
          %v510 = vpop.f32.mrf.mxu0
          %511 = vmatprep.mubr.f32.mxu0 0.0
          %512 = vmatmul.mubr.f32.gmra.mxu0 %v348
          %v513 = vpop.f32.mrf.mxu0
          %v514 = vadd.f32 0.0, %v513
          %v515 = vpop.f32.mrf.mxu0
          %516 = vmatprep.mubr.f32.mxu0 0.0
          %517 = vmatmul.mubr.f32.gmra.mxu0 %v351
          %v518 = vpop.f32.mrf.mxu0
          %v519 = vadd.f32 0.0, %v518
          %v520 = vpop.f32.mrf.mxu0
          %521 = vmatprep.mubr.f32.mxu0 0.0
          %522 = vmatmul.mubr.f32.gmra.mxu0 %v354
          %v523 = vpop.f32.mrf.mxu0
          %v524 = vadd.f32 0.0, %v523
          %v525 = vpop.f32.mrf.mxu0
          %526 = vmatprep.mubr.f32.mxu0 0.0
          %527 = vmatmul.mubr.f32.gmra.mxu0 %v357
          %v528 = vpop.f32.mrf.mxu0
          %v529 = vadd.f32 0.0, %v528
          %v530 = vpop.f32.mrf.mxu0
          %531 = vmatprep.mubr.f32.mxu0 0.0
          %532 = vmatmul.mubr.f32.gmra.mxu0 %v360
          %v533 = vpop.f32.mrf.mxu0
          %v534 = vadd.f32 0.0, %v533
          %v535 = vpop.f32.mrf.mxu0
          %536 = vmatprep.mubr.f32.mxu0 0.0
          %537 = vmatmul.mubr.f32.gmra.mxu0 %v363
          %v538 = vpop.f32.mrf.mxu0
          %v539 = vadd.f32 0.0, %v538
          %v540 = vpop.f32.mrf.mxu0
          %541 = vmatprep.mubr.f32.mxu0 0.0
          %542 = vmatmul.mubr.f32.gmra.mxu0 %v366
          %v543 = vpop.f32.mrf.mxu0
          %v544 = vadd.f32 0.0, %v543
          %v545 = vpop.f32.mrf.mxu0
          %546 = vmatprep.mubr.f32.mxu0 0.0
          %547 = vmatmul.mubr.f32.gmra.mxu0 %v369
          %v548 = vpop.f32.mrf.mxu0
          %v549 = vadd.f32 0.0, %v548
          %v550 = vpop.f32.mrf.mxu0
          %551 = vmatprep.mubr.f32.mxu0 0.0
          %552 = vmatmul.mubr.f32.gmra.mxu0 %v372
          %v553 = vpop.f32.mrf.mxu0
          %v554 = vadd.f32 0.0, %v553
          %v555 = vpop.f32.mrf.mxu0
          %556 = vmatprep.mubr.f32.mxu0 0.0
          %557 = vmatmul.mubr.f32.gmra.mxu0 %v375
          %v558 = vpop.f32.mrf.mxu0
          %v559 = vadd.f32 0.0, %v558
          %v560 = vpop.f32.mrf.mxu0
          %561 = vmatprep.mubr.f32.mxu0 0.0
          %562 = vmatmul.mubr.f32.gmra.mxu0 %v378
          %v563 = vpop.f32.mrf.mxu0
          %v564 = vadd.f32 0.0, %v563
          %v565 = vpop.f32.mrf.mxu0
          %566 = vmatprep.mubr.f32.mxu0 0.0
          %567 = vmatmul.mubr.f32.gmra.mxu0 %v381
          %v568 = vpop.f32.mrf.mxu0
          %v569 = vadd.f32 0.0, %v568
          %v570 = vpop.f32.mrf.mxu0
          %571 = vmatprep.mubr.f32.mxu0 0.0
          %572 = vmatmul.mubr.f32.gmra.mxu0 %v384
          %v573 = vpop.f32.mrf.mxu0
          %v574 = vadd.f32 0.0, %v573
          %v575 = vpop.f32.mrf.mxu0
          %576 = vmatprep.mubr.f32.mxu0 0.0
          %577 = vmatmul.mubr.f32.gmra.mxu0 %v387
          %v578 = vpop.f32.mrf.mxu0
          %v579 = vadd.f32 0.0, %v578
          %v580 = vpop.f32.mrf.mxu0
          %581 = vmatprep.mubr.f32.mxu0 0.0
          %582 = vmatmul.mubr.f32.gmra.mxu0 %v390
          %v583 = vpop.f32.mrf.mxu0
          %v584 = vadd.f32 0.0, %v583
          %v585 = vpop.f32.mrf.mxu0
          %586 = vmatprep.mubr.f32.mxu0 0.0
          %587 = vmatmul.mubr.f32.gmra.mxu0 %v393
          %v588 = vpop.f32.mrf.mxu0
          %v589 = vadd.f32 0.0, %v588
          %v590 = vpop.f32.mrf.mxu0
          %591 = vmatprep.mubr.f32.mxu0 0.0
          %592 = vmatmul.mubr.f32.gmra.mxu0 %v396
          %v593 = vpop.f32.mrf.mxu0
          %v594 = vadd.f32 0.0, %v593
          %v595 = vpop.f32.mrf.mxu0
          %596 = vmatprep.mubr.f32.mxu0 0.0
          %597 = vmatmul.mubr.f32.gmra.mxu0 %v399
          %v598 = vpop.f32.mrf.mxu0
          %v599 = vadd.f32 0.0, %v598
          %v600 = vpop.f32.mrf.mxu0
          %601 = vmatprep.mubr.f32.mxu0 0.0
          %602 = vmatmul.mubr.f32.gmra.mxu0 %v402
          %v603 = vpop.f32.mrf.mxu0
          %v604 = vadd.f32 0.0, %v603
          %v605 = vpop.f32.mrf.mxu0
          %606 = vmatprep.mubr.f32.mxu0 0.0
          %607 = vmatmul.mubr.f32.gmra.mxu0 %v405
          %v608 = vpop.f32.mrf.mxu0
          %v609 = vadd.f32 0.0, %v608
          %v610 = vpop.f32.mrf.mxu0
          %611 = vmatprep.mubr.f32.mxu0 0.0
          %612 = vmatmul.mubr.f32.gmra.mxu0 %v408
          %v613 = vpop.f32.mrf.mxu0
          %v614 = vadd.f32 0.0, %v613
          %v615 = vpop.f32.mrf.mxu0
          %616 = vmatprep.mubr.f32.mxu0 0.0
          %617 = vmatmul.mubr.f32.gmra.mxu0 %v411
          %v618 = vpop.f32.mrf.mxu0
          %v619 = vadd.f32 0.0, %v618
          %v620 = vpop.f32.mrf.mxu0
          %621 = vmatprep.mubr.f32.mxu0 0.0
          %622 = vmatmul.mubr.f32.gmra.mxu0 %v414
          %v623 = vpop.f32.mrf.mxu0
          %v624 = vadd.f32 0.0, %v623
          %v625 = vpop.f32.mrf.mxu0
          %626 = vmatprep.mubr.f32.mxu0 0.0
          %627 = vmatmul.mubr.f32.gmra.mxu0 %v417
          %v628 = vpop.f32.mrf.mxu0
          %v629 = vadd.f32 0.0, %v628
          %v630 = vpop.f32.mrf.mxu0
          %631 = vmatprep.mubr.f32.mxu0 0.0
          %632 = vmatmul.mubr.f32.gmra.mxu0 %v420
          %v633 = vpop.f32.mrf.mxu0
          %v634 = vadd.f32 0.0, %v633
          %v635 = vpop.f32.mrf.mxu0
          %636 = vmatprep.mubr.f32.mxu0 0.0
          %637 = vmatmul.mubr.f32.gmra.mxu0 %v423
          %v638 = vpop.f32.mrf.mxu0
          %v639 = vadd.f32 0.0, %v638
          %v640 = vpop.f32.mrf.mxu0
          %641 = vmatprep.mubr.f32.mxu0 0.0
          %642 = vmatmul.mubr.f32.gmra.mxu0 %v426
          %v643 = vpop.f32.mrf.mxu0
          %v644 = vadd.f32 0.0, %v643
          %v645 = vpop.f32.mrf.mxu0
          %646 = vmatprep.mubr.f32.mxu0 0.0
          %647 = vmatmul.mubr.f32.gmra.mxu0 %v429
          %v648 = vpop.f32.mrf.mxu0
          %v649 = vadd.f32 0.0, %v648
          %v650 = vpop.f32.mrf.mxu0
          %651 = vmatprep.mubr.f32.mxu0 0.0
          %652 = vmatmul.mubr.f32.gmra.mxu0 %v432
          %v653 = vpop.f32.mrf.mxu0
          %v654 = vadd.f32 0.0, %v653
          %v655 = vpop.f32.mrf.mxu0
          %656 = vmatprep.mubr.f32.mxu0 0.0
          %657 = vmatmul.mubr.f32.gmra.mxu0 %v435
          %v658 = vpop.f32.mrf.mxu0
          %v659 = vadd.f32 0.0, %v658
          %v660 = vpop.f32.mrf.mxu0
          %661 = vdwg.mxu0
          %vm662 = vcmask 130048
          %663 = vst.msk [vmem:[#allocation2] sm:$0xff] %vm662, %v504
          %664 = vst.msk [vmem:[#allocation2 + $0x8] sm:$0xff] %vm662, %v509
          %665 = vst.msk [vmem:[#allocation2 + $0x10] sm:$0xff] %vm662, %v514
          %666 = vst.msk [vmem:[#allocation2 + $0x18] sm:$0xff] %vm662, %v519
          %667 = vst.msk [vmem:[#allocation2 + $0x20] sm:$0xff] %vm662, %v524
          %668 = vst.msk [vmem:[#allocation2 + $0x28] sm:$0xff] %vm662, %v529
          %669 = vst.msk [vmem:[#allocation2 + $0x30] sm:$0xff] %vm662, %v534
          %670 = vst.msk [vmem:[#allocation2 + $0x38] sm:$0xff] %vm662, %v539
          %671 = vst.msk [vmem:[#allocation2 + $0x40] sm:$0xff] %vm662, %v544
          %672 = vst.msk [vmem:[#allocation2 + $0x48] sm:$0xff] %vm662, %v549
          %673 = vst.msk [vmem:[#allocation2 + $0x50] sm:$0xff] %vm662, %v554
          %674 = vst.msk [vmem:[#allocation2 + $0x58] sm:$0xff] %vm662, %v559
          %675 = vst.msk [vmem:[#allocation2 + $0x60] sm:$0xff] %vm662, %v564
          %676 = vst.msk [vmem:[#allocation2 + $0x68] sm:$0xff] %vm662, %v569
          %677 = vst.msk [vmem:[#allocation2 + $0x70] sm:$0xff] %vm662, %v574
          %678 = vst.msk [vmem:[#allocation2 + $0x78] sm:$0xff] %vm662, %v579
          %679 = vst.msk [vmem:[#allocation2 + $0x80] sm:$0xff] %vm662, %v584
          %680 = vst.msk [vmem:[#allocation2 + $0x88] sm:$0xff] %vm662, %v589
          %681 = vst.msk [vmem:[#allocation2 + $0x90] sm:$0xff] %vm662, %v594
          %682 = vst.msk [vmem:[#allocation2 + $0x98] sm:$0xff] %vm662, %v599
          %683 = vst.msk [vmem:[#allocation2 + $0xa0] sm:$0xff] %vm662, %v604
          %684 = vst.msk [vmem:[#allocation2 + $0xa8] sm:$0xff] %vm662, %v609
          %685 = vst.msk [vmem:[#allocation2 + $0xb0] sm:$0xff] %vm662, %v614
          %686 = vst.msk [vmem:[#allocation2 + $0xb8] sm:$0xff] %vm662, %v619
          %687 = vst.msk [vmem:[#allocation2 + $0xc0] sm:$0xff] %vm662, %v624
          %688 = vst.msk [vmem:[#allocation2 + $0xc8] sm:$0xff] %vm662, %v629
          %689 = vst.msk [vmem:[#allocation2 + $0xd0] sm:$0xff] %vm662, %v634
          %690 = vst.msk [vmem:[#allocation2 + $0xd8] sm:$0xff] %vm662, %v639
          %691 = vst.msk [vmem:[#allocation2 + $0xe0] sm:$0xff] %vm662, %v644
          %692 = vst.msk [vmem:[#allocation2 + $0xe8] sm:$0xff] %vm662, %v649
          %693 = vst.msk [vmem:[#allocation2 + $0xf0] sm:$0xff] %vm662, %v654
          %694 = vst.msk [vmem:[#allocation2 + $0xf8] sm:$0xff] %vm662, %v659
        $region40: #{tpu_custom_call.1} parent=35 // pred_fallthru
          _
        %v695 = vld [vmem:[%s278] sm:$0xff]
        %v696 = vld [vmem:[%s278 + $0x8] sm:$0xff]
        %v697 = vld [vmem:[%s278 + $0x10] sm:$0xff]
        %v698 = vld [vmem:[%s278 + $0x18] sm:$0xff]
        %v699 = vld [vmem:[%s278 + $0x20] sm:$0xff]
        %v700 = vld [vmem:[%s278 + $0x28] sm:$0xff]
        %v701 = vld [vmem:[%s278 + $0x30] sm:$0xff]
        %v702 = vld [vmem:[%s278 + $0x38] sm:$0xff]
        %v703 = vld [vmem:[%s278 + $0x40] sm:$0xff]
        %v704 = vld [vmem:[%s278 + $0x48] sm:$0xff]
        %v705 = vld [vmem:[%s278 + $0x50] sm:$0xff]
        %v706 = vld [vmem:[%s278 + $0x58] sm:$0xff]
        %v707 = vld [vmem:[%s278 + $0x60] sm:$0xff]
        %v708 = vld [vmem:[%s278 + $0x68] sm:$0xff]
        %v709 = vld [vmem:[%s278 + $0x70] sm:$0xff]
        %v710 = vld [vmem:[%s278 + $0x78] sm:$0xff]
        %v711 = vld [vmem:[%s289] sm:$0xff]
        %v712 = vld [vmem:[%s289 + $0x8] sm:$0xff]
        %v713 = vld [vmem:[%s289 + $0x10] sm:$0xff]
        %v714 = vld [vmem:[%s289 + $0x18] sm:$0xff]
        %v715 = vld [vmem:[%s289 + $0x20] sm:$0xff]
        %v716 = vld [vmem:[%s289 + $0x28] sm:$0xff]
        %v717 = vld [vmem:[%s289 + $0x30] sm:$0xff]
        %v718 = vld [vmem:[%s289 + $0x38] sm:$0xff]
        %vm719 = vcmask 523264
        %v721 = vsel %vm719, %v695, 0
        %v724 = vsel %vm719, %v696, 0
        %v727 = vsel %vm719, %v697, 0
        %v730 = vsel %vm719, %v698, 0
        %v733 = vsel %vm719, %v699, 0
        %v736 = vsel %vm719, %v700, 0
        %v739 = vsel %vm719, %v701, 0
        %v742 = vsel %vm719, %v702, 0
        %v745 = vsel %vm719, %v703, 0
        %v748 = vsel %vm719, %v704, 0
        %v751 = vsel %vm719, %v705, 0
        %v754 = vsel %vm719, %v706, 0
        %v757 = vsel %vm719, %v707, 0
        %v760 = vsel %vm719, %v708, 0
        %v763 = vsel %vm719, %v709, 0
        %v766 = vsel %vm719, %v710, 0
        %768 = vmatprep.subr.mxu0 0.0
        %769 = vmatpush1.msra.mxu0 0.0
        %770 = vmatprep.subr.mxu0 0.0
        %771 = vmatpush1.msra.mxu0 0.0
        %772 = vmatprep.subr.mxu0 0.0
        %773 = vmatpush1.msra.mxu0 0.0
        %774 = vmatprep.subr.mxu0 0.0
        %775 = vmatpush1.msra.mxu0 0.0
        %776 = vmatprep.subr.mxu0 0.0
        %777 = vmatpush1.msra.mxu0 0.0
        %778 = vmatprep.subr.mxu0 0.0
        %779 = vmatpush1.msra.mxu0 0.0
        %780 = vmatprep.subr.mxu0 0.0
        %781 = vmatpush1.msra.mxu0 0.0
        %782 = vmatprep.subr.mxu0 0.0
        %783 = vmatpush1.msra.mxu0 0.0
        %784 = vmatprep.subr.mxu0 0.0
        %785 = vmatpush1.msra.mxu0 %v718
        %786 = vmatprep.subr.mxu0 0.0
        %787 = vmatpush1.msra.mxu0 %v717
        %788 = vmatprep.subr.mxu0 0.0
        %789 = vmatpush1.msra.mxu0 %v716
        %790 = vmatprep.subr.mxu0 0.0
        %791 = vmatpush1.msra.mxu0 %v715
        %792 = vmatprep.subr.mxu0 0.0
        %793 = vmatpush1.msra.mxu0 %v714
        %794 = vmatprep.subr.mxu0 0.0
        %795 = vmatpush1.msra.mxu0 %v713
        %796 = vmatprep.subr.mxu0 0.0
        %797 = vmatpush1.msra.mxu0 %v712
        %798 = vmatprep.subr.mxu0 0.0
        %799 = vmatpush1.msra.mxu0 %v711
        %800 = vmatprep.subr.mxu0 0.0
        %801 = vmatpush2.msra.mxu0 0.0
        %802 = vmatprep.subr.mxu0 0.0
        %803 = vmatpush2.msra.mxu0 0.0
        %804 = vmatprep.subr.mxu0 0.0
        %805 = vmatpush2.msra.mxu0 0.0
        %806 = vmatprep.subr.mxu0 0.0
        %807 = vmatpush2.msra.mxu0 0.0
        %808 = vmatprep.subr.mxu0 0.0
        %809 = vmatpush2.msra.mxu0 0.0
        %810 = vmatprep.subr.mxu0 0.0
        %811 = vmatpush2.msra.mxu0 0.0
        %812 = vmatprep.subr.mxu0 0.0
        %813 = vmatpush2.msra.mxu0 0.0
        %814 = vmatprep.subr.mxu0 0.0
        %815 = vmatpush2.msra.mxu0 0.0
        %816 = vmatprep.subr.mxu0 0.0
        %817 = vmatpush2.msra.mxu0 0.0
        %818 = vmatprep.subr.mxu0 0.0
        %819 = vmatpush2.msra.mxu0 0.0
        %820 = vmatprep.subr.mxu0 0.0
        %821 = vmatpush2.msra.mxu0 0.0
        %822 = vmatprep.subr.mxu0 0.0
        %823 = vmatpush2.msra.mxu0 0.0
        %824 = vmatprep.subr.mxu0 0.0
        %825 = vmatpush2.msra.mxu0 0.0
        %826 = vmatprep.subr.mxu0 0.0
        %827 = vmatpush2.msra.mxu0 0.0
        %828 = vmatprep.subr.mxu0 0.0
        %829 = vmatpush2.msra.mxu0 0.0
        %830 = vmatprep.subr.mxu0 0.0
        %831 = vmatpush2.msra.mxu0 0.0
        %832 = vmatprep.mubr.f32.mxu0 0.0
        %833 = vmatmul.mubr.f32.gmra.mxu0 %v721
        %v834 = vpop.f32.mrf.mxu0
        %v835 = vadd.f32 0.0, %v834
        %v836 = vpop.f32.mrf.mxu0
        %837 = vmatprep.mubr.f32.mxu0 0.0
        %838 = vmatmul.mubr.f32.gmra.mxu0 %v724
        %v839 = vpop.f32.mrf.mxu0
        %v840 = vadd.f32 0.0, %v839
        %v841 = vpop.f32.mrf.mxu0
        %842 = vmatprep.mubr.f32.mxu0 0.0
        %843 = vmatmul.mubr.f32.gmra.mxu0 %v727
        %v844 = vpop.f32.mrf.mxu0
        %v845 = vadd.f32 0.0, %v844
        %v846 = vpop.f32.mrf.mxu0
        %847 = vmatprep.mubr.f32.mxu0 0.0
        %848 = vmatmul.mubr.f32.gmra.mxu0 %v730
        %v849 = vpop.f32.mrf.mxu0
        %v850 = vadd.f32 0.0, %v849
        %v851 = vpop.f32.mrf.mxu0
        %852 = vmatprep.mubr.f32.mxu0 0.0
        %853 = vmatmul.mubr.f32.gmra.mxu0 %v733
        %v854 = vpop.f32.mrf.mxu0
        %v855 = vadd.f32 0.0, %v854
        %v856 = vpop.f32.mrf.mxu0
        %857 = vmatprep.mubr.f32.mxu0 0.0
        %858 = vmatmul.mubr.f32.gmra.mxu0 %v736
        %v859 = vpop.f32.mrf.mxu0
        %v860 = vadd.f32 0.0, %v859
        %v861 = vpop.f32.mrf.mxu0
        %862 = vmatprep.mubr.f32.mxu0 0.0
        %863 = vmatmul.mubr.f32.gmra.mxu0 %v739
        %v864 = vpop.f32.mrf.mxu0
        %v865 = vadd.f32 0.0, %v864
        %v866 = vpop.f32.mrf.mxu0
        %867 = vmatprep.mubr.f32.mxu0 0.0
        %868 = vmatmul.mubr.f32.gmra.mxu0 %v742
        %v869 = vpop.f32.mrf.mxu0
        %v870 = vadd.f32 0.0, %v869
        %v871 = vpop.f32.mrf.mxu0
        %872 = vmatprep.mubr.f32.mxu0 0.0
        %873 = vmatmul.mubr.f32.gmra.mxu0 %v745
        %v874 = vpop.f32.mrf.mxu0
        %v875 = vadd.f32 0.0, %v874
        %v876 = vpop.f32.mrf.mxu0
        %877 = vmatprep.mubr.f32.mxu0 0.0
        %878 = vmatmul.mubr.f32.gmra.mxu0 %v748
        %v879 = vpop.f32.mrf.mxu0
        %v880 = vadd.f32 0.0, %v879
        %v881 = vpop.f32.mrf.mxu0
        %882 = vmatprep.mubr.f32.mxu0 0.0
        %883 = vmatmul.mubr.f32.gmra.mxu0 %v751
        %v884 = vpop.f32.mrf.mxu0
        %v885 = vadd.f32 0.0, %v884
        %v886 = vpop.f32.mrf.mxu0
        %887 = vmatprep.mubr.f32.mxu0 0.0
        %888 = vmatmul.mubr.f32.gmra.mxu0 %v754
        %v889 = vpop.f32.mrf.mxu0
        %v890 = vadd.f32 0.0, %v889
        %v891 = vpop.f32.mrf.mxu0
        %892 = vmatprep.mubr.f32.mxu0 0.0
        %893 = vmatmul.mubr.f32.gmra.mxu0 %v757
        %v894 = vpop.f32.mrf.mxu0
        %v895 = vadd.f32 0.0, %v894
        %v896 = vpop.f32.mrf.mxu0
        %897 = vmatprep.mubr.f32.mxu0 0.0
        %898 = vmatmul.mubr.f32.gmra.mxu0 %v760
        %v899 = vpop.f32.mrf.mxu0
        %v900 = vadd.f32 0.0, %v899
        %v901 = vpop.f32.mrf.mxu0
        %902 = vmatprep.mubr.f32.mxu0 0.0
        %903 = vmatmul.mubr.f32.gmra.mxu0 %v763
        %v904 = vpop.f32.mrf.mxu0
        %v905 = vadd.f32 0.0, %v904
        %v906 = vpop.f32.mrf.mxu0
        %907 = vmatprep.mubr.f32.mxu0 0.0
        %908 = vmatmul.mubr.f32.gmra.mxu0 %v766
        %v909 = vpop.f32.mrf.mxu0
        %v910 = vadd.f32 0.0, %v909
        %v911 = vpop.f32.mrf.mxu0
        %912 = vdwg.mxu0
        %v913 = vld [vmem:[#allocation2] sm:$0xff]
        %v914 = vld [vmem:[#allocation2 + $0x8] sm:$0xff]
        %v915 = vld [vmem:[#allocation2 + $0x10] sm:$0xff]
        %v916 = vld [vmem:[#allocation2 + $0x18] sm:$0xff]
        %v917 = vld [vmem:[#allocation2 + $0x20] sm:$0xff]
        %v918 = vld [vmem:[#allocation2 + $0x28] sm:$0xff]
        %v919 = vld [vmem:[#allocation2 + $0x30] sm:$0xff]
        %v920 = vld [vmem:[#allocation2 + $0x38] sm:$0xff]
        %v921 = vld [vmem:[#allocation2 + $0x40] sm:$0xff]
        %v922 = vld [vmem:[#allocation2 + $0x48] sm:$0xff]
        %v923 = vld [vmem:[#allocation2 + $0x50] sm:$0xff]
        %v924 = vld [vmem:[#allocation2 + $0x58] sm:$0xff]
        %v925 = vld [vmem:[#allocation2 + $0x60] sm:$0xff]
        %v926 = vld [vmem:[#allocation2 + $0x68] sm:$0xff]
        %v927 = vld [vmem:[#allocation2 + $0x70] sm:$0xff]
        %v928 = vld [vmem:[#allocation2 + $0x78] sm:$0xff]
        %v929 = vld [vmem:[#allocation2 + $0x80] sm:$0xff]
        %v930 = vld [vmem:[#allocation2 + $0x88] sm:$0xff]
        %v931 = vld [vmem:[#allocation2 + $0x90] sm:$0xff]
        %v932 = vld [vmem:[#allocation2 + $0x98] sm:$0xff]
        %v933 = vld [vmem:[#allocation2 + $0xa0] sm:$0xff]
        %v934 = vld [vmem:[#allocation2 + $0xa8] sm:$0xff]
        %v935 = vld [vmem:[#allocation2 + $0xb0] sm:$0xff]
        %v936 = vld [vmem:[#allocation2 + $0xb8] sm:$0xff]
        %v937 = vld [vmem:[#allocation2 + $0xc0] sm:$0xff]
        %v938 = vld [vmem:[#allocation2 + $0xc8] sm:$0xff]
        %v939 = vld [vmem:[#allocation2 + $0xd0] sm:$0xff]
        %v940 = vld [vmem:[#allocation2 + $0xd8] sm:$0xff]
        %v941 = vld [vmem:[#allocation2 + $0xe0] sm:$0xff]
        %v942 = vld [vmem:[#allocation2 + $0xe8] sm:$0xff]
        %v943 = vld [vmem:[#allocation2 + $0xf0] sm:$0xff]
        %v944 = vld [vmem:[#allocation2 + $0xf8] sm:$0xff]
        %vm945 = vcmask 130048
        %v947 = vsel %vm945, %v835, 0
        %v950 = vsel %vm945, %v840, 0
        %v953 = vsel %vm945, %v845, 0
        %v956 = vsel %vm945, %v850, 0
        %v959 = vsel %vm945, %v855, 0
        %v962 = vsel %vm945, %v860, 0
        %v965 = vsel %vm945, %v865, 0
        %v968 = vsel %vm945, %v870, 0
        %v971 = vsel %vm945, %v875, 0
        %v974 = vsel %vm945, %v880, 0
        %v977 = vsel %vm945, %v885, 0
        %v980 = vsel %vm945, %v890, 0
        %v983 = vsel %vm945, %v895, 0
        %v986 = vsel %vm945, %v900, 0
        %v989 = vsel %vm945, %v905, 0
        %v992 = vsel %vm945, %v910, 0
        %v995 = vsel %vm945, %v913, 0
        %v998 = vsel %vm945, %v914, 0
        %v1001 = vsel %vm945, %v915, 0
        %v1004 = vsel %vm945, %v916, 0
        %v1007 = vsel %vm945, %v917, 0
        %v1010 = vsel %vm945, %v918, 0
        %v1013 = vsel %vm945, %v919, 0
        %v1016 = vsel %vm945, %v920, 0
        %v1019 = vsel %vm945, %v921, 0
        %v1022 = vsel %vm945, %v922, 0
        %v1025 = vsel %vm945, %v923, 0
        %v1028 = vsel %vm945, %v924, 0
        %v1031 = vsel %vm945, %v925, 0
        %v1034 = vsel %vm945, %v926, 0
        %v1037 = vsel %vm945, %v927, 0
        %v1040 = vsel %vm945, %v928, 0
        %v1043 = vsel %vm945, %v929, 0
        %v1046 = vsel %vm945, %v930, 0
        %v1049 = vsel %vm945, %v931, 0
        %v1052 = vsel %vm945, %v932, 0
        %v1055 = vsel %vm945, %v933, 0
        %v1058 = vsel %vm945, %v934, 0
        %v1061 = vsel %vm945, %v935, 0
        %v1064 = vsel %vm945, %v936, 0
        %v1067 = vsel %vm945, %v937, 0
        %v1070 = vsel %vm945, %v938, 0
        %v1073 = vsel %vm945, %v939, 0
        %v1076 = vsel %vm945, %v940, 0
        %v1079 = vsel %vm945, %v941, 0
        %v1082 = vsel %vm945, %v942, 0
        %v1085 = vsel %vm945, %v943, 0
        %v1088 = vsel %vm945, %v944, 0
        %1090 = vmatprep.subr.mxu0 0.0
        %1091 = vmatpush1.xpose.msra.mxu0 %v1040
        %1092 = vmatprep.subr.mxu0 0.0
        %1093 = vmatpush1.xpose.msra.mxu0 %v1037
        %1094 = vmatprep.subr.mxu0 0.0
        %1095 = vmatpush1.xpose.msra.mxu0 %v1034
        %1096 = vmatprep.subr.mxu0 0.0
        %1097 = vmatpush1.xpose.msra.mxu0 %v1031
        %1098 = vmatprep.subr.mxu0 0.0
        %1099 = vmatpush1.xpose.msra.mxu0 %v1028
        %1100 = vmatprep.subr.mxu0 0.0
        %1101 = vmatpush1.xpose.msra.mxu0 %v1025
        %1102 = vmatprep.subr.mxu0 0.0
        %1103 = vmatpush1.xpose.msra.mxu0 %v1022
        %1104 = vmatprep.subr.mxu0 0.0
        %1105 = vmatpush1.xpose.msra.mxu0 %v1019
        %1106 = vmatprep.subr.mxu0 0.0
        %1107 = vmatpush1.xpose.msra.mxu0 %v1016
        %1108 = vmatprep.subr.mxu0 0.0
        %1109 = vmatpush1.xpose.msra.mxu0 %v1013
        %1110 = vmatprep.subr.mxu0 0.0
        %1111 = vmatpush1.xpose.msra.mxu0 %v1010
        %1112 = vmatprep.subr.mxu0 0.0
        %1113 = vmatpush1.xpose.msra.mxu0 %v1007
        %1114 = vmatprep.subr.mxu0 0.0
        %1115 = vmatpush1.xpose.msra.mxu0 %v1004
        %1116 = vmatprep.subr.mxu0 0.0
        %1117 = vmatpush1.xpose.msra.mxu0 %v1001
        %1118 = vmatprep.subr.mxu0 0.0
        %1119 = vmatpush1.xpose.msra.mxu0 %v998
        %1120 = vmatprep.subr.mxu0 0.0
        %1121 = vmatpush1.xpose.msra.mxu0 %v995
        %1122 = vmatprep.subr.mxu0 0.0
        %1123 = vmatpush2.xpose.msra.mxu0 %v1088
        %1124 = vmatprep.subr.mxu0 0.0
        %1125 = vmatpush2.xpose.msra.mxu0 %v1085
        %1126 = vmatprep.subr.mxu0 0.0
        %1127 = vmatpush2.xpose.msra.mxu0 %v1082
        %1128 = vmatprep.subr.mxu0 0.0
        %1129 = vmatpush2.xpose.msra.mxu0 %v1079
        %1130 = vmatprep.subr.mxu0 0.0
        %1131 = vmatpush2.xpose.msra.mxu0 %v1076
        %1132 = vmatprep.subr.mxu0 0.0
        %1133 = vmatpush2.xpose.msra.mxu0 %v1073
        %1134 = vmatprep.subr.mxu0 0.0
        %1135 = vmatpush2.xpose.msra.mxu0 %v1070
        %1136 = vmatprep.subr.mxu0 0.0
        %1137 = vmatpush2.xpose.msra.mxu0 %v1067
        %1138 = vmatprep.subr.mxu0 0.0
        %1139 = vmatpush2.xpose.msra.mxu0 %v1064
        %1140 = vmatprep.subr.mxu0 0.0
        %1141 = vmatpush2.xpose.msra.mxu0 %v1061
        %1142 = vmatprep.subr.mxu0 0.0
        %1143 = vmatpush2.xpose.msra.mxu0 %v1058
        %1144 = vmatprep.subr.mxu0 0.0
        %1145 = vmatpush2.xpose.msra.mxu0 %v1055
        %1146 = vmatprep.subr.mxu0 0.0
        %1147 = vmatpush2.xpose.msra.mxu0 %v1052
        %1148 = vmatprep.subr.mxu0 0.0
        %1149 = vmatpush2.xpose.msra.mxu0 %v1049
        %1150 = vmatprep.subr.mxu0 0.0
        %1151 = vmatpush2.xpose.msra.mxu0 %v1046
        %1152 = vmatprep.subr.mxu0 0.0
        %1153 = vmatpush2.xpose.msra.mxu0 %v1043
        %1154 = vmatprep.mubr.f32.mxu0 0.0
        %1155 = vmatmul.mubr.f32.gmra.mxu0 %v947
        %v1156 = vpop.f32.mrf.mxu0
        %v1157 = vadd.f32 0.0, %v1156
        %v1158 = vpop.f32.mrf.mxu0
        %v1159 = vadd.f32 0.0, %v1158
        %1160 = vmatprep.mubr.f32.mxu0 0.0
        %1161 = vmatmul.mubr.f32.gmra.mxu0 %v950
        %v1162 = vpop.f32.mrf.mxu0
        %v1163 = vadd.f32 0.0, %v1162
        %v1164 = vpop.f32.mrf.mxu0
        %v1165 = vadd.f32 0.0, %v1164
        %1166 = vmatprep.mubr.f32.mxu0 0.0
        %1167 = vmatmul.mubr.f32.gmra.mxu0 %v953
        %v1168 = vpop.f32.mrf.mxu0
        %v1169 = vadd.f32 0.0, %v1168
        %v1170 = vpop.f32.mrf.mxu0
        %v1171 = vadd.f32 0.0, %v1170
        %1172 = vmatprep.mubr.f32.mxu0 0.0
        %1173 = vmatmul.mubr.f32.gmra.mxu0 %v956
        %v1174 = vpop.f32.mrf.mxu0
        %v1175 = vadd.f32 0.0, %v1174
        %v1176 = vpop.f32.mrf.mxu0
        %v1177 = vadd.f32 0.0, %v1176
        %1178 = vmatprep.mubr.f32.mxu0 0.0
        %1179 = vmatmul.mubr.f32.gmra.mxu0 %v959
        %v1180 = vpop.f32.mrf.mxu0
        %v1181 = vadd.f32 0.0, %v1180
        %v1182 = vpop.f32.mrf.mxu0
        %v1183 = vadd.f32 0.0, %v1182
        %1184 = vmatprep.mubr.f32.mxu0 0.0
        %1185 = vmatmul.mubr.f32.gmra.mxu0 %v962
        %v1186 = vpop.f32.mrf.mxu0
        %v1187 = vadd.f32 0.0, %v1186
        %v1188 = vpop.f32.mrf.mxu0
        %v1189 = vadd.f32 0.0, %v1188
        %1190 = vmatprep.mubr.f32.mxu0 0.0
        %1191 = vmatmul.mubr.f32.gmra.mxu0 %v965
        %v1192 = vpop.f32.mrf.mxu0
        %v1193 = vadd.f32 0.0, %v1192
        %v1194 = vpop.f32.mrf.mxu0
        %v1195 = vadd.f32 0.0, %v1194
        %1196 = vmatprep.mubr.f32.mxu0 0.0
        %1197 = vmatmul.mubr.f32.gmra.mxu0 %v968
        %v1198 = vpop.f32.mrf.mxu0
        %v1199 = vadd.f32 0.0, %v1198
        %v1200 = vpop.f32.mrf.mxu0
        %v1201 = vadd.f32 0.0, %v1200
        %1202 = vmatprep.mubr.f32.mxu0 0.0
        %1203 = vmatmul.mubr.f32.gmra.mxu0 %v971
        %v1204 = vpop.f32.mrf.mxu0
        %v1205 = vadd.f32 0.0, %v1204
        %v1206 = vpop.f32.mrf.mxu0
        %v1207 = vadd.f32 0.0, %v1206
        %1208 = vmatprep.mubr.f32.mxu0 0.0
        %1209 = vmatmul.mubr.f32.gmra.mxu0 %v974
        %v1210 = vpop.f32.mrf.mxu0
        %v1211 = vadd.f32 0.0, %v1210
        %v1212 = vpop.f32.mrf.mxu0
        %v1213 = vadd.f32 0.0, %v1212
        %1214 = vmatprep.mubr.f32.mxu0 0.0
        %1215 = vmatmul.mubr.f32.gmra.mxu0 %v977
        %v1216 = vpop.f32.mrf.mxu0
        %v1217 = vadd.f32 0.0, %v1216
        %v1218 = vpop.f32.mrf.mxu0
        %v1219 = vadd.f32 0.0, %v1218
        %1220 = vmatprep.mubr.f32.mxu0 0.0
        %1221 = vmatmul.mubr.f32.gmra.mxu0 %v980
        %v1222 = vpop.f32.mrf.mxu0
        %v1223 = vadd.f32 0.0, %v1222
        %v1224 = vpop.f32.mrf.mxu0
        %v1225 = vadd.f32 0.0, %v1224
        %1226 = vmatprep.mubr.f32.mxu0 0.0
        %1227 = vmatmul.mubr.f32.gmra.mxu0 %v983
        %v1228 = vpop.f32.mrf.mxu0
        %v1229 = vadd.f32 0.0, %v1228
        %v1230 = vpop.f32.mrf.mxu0
        %v1231 = vadd.f32 0.0, %v1230
        %1232 = vmatprep.mubr.f32.mxu0 0.0
        %1233 = vmatmul.mubr.f32.gmra.mxu0 %v986
        %v1234 = vpop.f32.mrf.mxu0
        %v1235 = vadd.f32 0.0, %v1234
        %v1236 = vpop.f32.mrf.mxu0
        %v1237 = vadd.f32 0.0, %v1236
        %1238 = vmatprep.mubr.f32.mxu0 0.0
        %1239 = vmatmul.mubr.f32.gmra.mxu0 %v989
        %v1240 = vpop.f32.mrf.mxu0
        %v1241 = vadd.f32 0.0, %v1240
        %v1242 = vpop.f32.mrf.mxu0
        %v1243 = vadd.f32 0.0, %v1242
        %1244 = vmatprep.mubr.f32.mxu0 0.0
        %1245 = vmatmul.mubr.f32.gmra.mxu0 %v992
        %v1246 = vpop.f32.mrf.mxu0
        %v1247 = vadd.f32 0.0, %v1246
        %v1248 = vpop.f32.mrf.mxu0
        %v1249 = vadd.f32 0.0, %v1248
        %1250 = vdwg.mxu0
        %1251 = vst [vmem:[%s269] sm:$0xff] %v1157
        %1252 = vst [vmem:[%s269 + $0x8] sm:$0xff] %v1159
        %1253 = vst [vmem:[%s269 + $0x10] sm:$0xff] %v1163
        %1254 = vst [vmem:[%s269 + $0x18] sm:$0xff] %v1165
        %1255 = vst [vmem:[%s269 + $0x20] sm:$0xff] %v1169
        %1256 = vst [vmem:[%s269 + $0x28] sm:$0xff] %v1171
        %1257 = vst [vmem:[%s269 + $0x30] sm:$0xff] %v1175
        %1258 = vst [vmem:[%s269 + $0x38] sm:$0xff] %v1177
        %1259 = vst [vmem:[%s269 + $0x40] sm:$0xff] %v1181
        %1260 = vst [vmem:[%s269 + $0x48] sm:$0xff] %v1183
        %1261 = vst [vmem:[%s269 + $0x50] sm:$0xff] %v1187
        %1262 = vst [vmem:[%s269 + $0x58] sm:$0xff] %v1189
        %1263 = vst [vmem:[%s269 + $0x60] sm:$0xff] %v1193
        %1264 = vst [vmem:[%s269 + $0x68] sm:$0xff] %v1195
        %1265 = vst [vmem:[%s269 + $0x70] sm:$0xff] %v1199
        %1266 = vst [vmem:[%s269 + $0x78] sm:$0xff] %v1201
        %1267 = vst [vmem:[%s269 + $0x80] sm:$0xff] %v1205
        %1268 = vst [vmem:[%s269 + $0x88] sm:$0xff] %v1207
        %1269 = vst [vmem:[%s269 + $0x90] sm:$0xff] %v1211
        %1270 = vst [vmem:[%s269 + $0x98] sm:$0xff] %v1213
        %1271 = vst [vmem:[%s269 + $0xa0] sm:$0xff] %v1217
        %1272 = vst [vmem:[%s269 + $0xa8] sm:$0xff] %v1219
        %1273 = vst [vmem:[%s269 + $0xb0] sm:$0xff] %v1223
        %1274 = vst [vmem:[%s269 + $0xb8] sm:$0xff] %v1225
        %1275 = vst [vmem:[%s269 + $0xc0] sm:$0xff] %v1229
        %1276 = vst [vmem:[%s269 + $0xc8] sm:$0xff] %v1231
        %1277 = vst [vmem:[%s269 + $0xd0] sm:$0xff] %v1235
        %1278 = vst [vmem:[%s269 + $0xd8] sm:$0xff] %v1237
        %1279 = vst [vmem:[%s269 + $0xe0] sm:$0xff] %v1241
        %1280 = vst [vmem:[%s269 + $0xe8] sm:$0xff] %v1243
        %1281 = vst [vmem:[%s269 + $0xf0] sm:$0xff] %v1247
        %1282 = vst [vmem:[%s269 + $0xf8] sm:$0xff] %v1249
        %s1283 = sand.u32 %s155, 1
        %s1284 = scalar_lea.sflag [#allocation4], %s1283
        %s1285 = sand.u32 %s155, 1
        %s1286 = smul.addr %s1285, 256
        %s1287 = scalar_lea.vmem [#allocation3], %s1286
        // Predicated region
        $region41: #{tpu_custom_call.1} parent=35 // pred_check
          %p1288 = pneg %p165
        $region42: #{tpu_custom_call.1} parent=35 // pred_check_branch
          %1290 = sbr.rel (%p1288) target = $region44
        $region43: #{tpu_custom_call.1} parent=35 // pred_region
          %s1291 = smul.u32 16, %s25
          %s1293 = ssub.s32 4096, 4096
          %1294 = vsyncadd %s1284, %s1293
          %s1295 = smul.addr %s1291, 2
          %s1296 = smul.addr %s24, 64
          %s1297 = sadd.s32 %s1295, %s1296
          %s1298 = smul.addr %s23, 256
          %s1299 = sadd.s32 %s1297, %s1298
          %s1300 = smul.addr %s1299, 128
          %s1301 = scalar_lea.hbm %s4, %s1300
          %s1302 = sshll.u32 %s1287, 4
          %s1303 = int_to_ptr.vmem [resolvable:$true] %s1302
          %1308 = dma.vmem_to_hbm [thread:$0]  %s1303, 4096, %s1301, %s1284, 256, 256, 16
        $region44: #{tpu_custom_call.1} parent=35 // pred_fallthru
          _
      $region36: #{tpu_custom_call.1} parent=5 // pred_fallthru
        _
      %p1309 = scmp.le.s32.totalorder 2, %s13
      // Predicated region
      $region45: #{tpu_custom_call.1} parent=5 // pred_check
        %p1310 = pneg %p1309
      $region46: #{tpu_custom_call.1} parent=5 // pred_check_branch
        %1312 = sbr.rel (%p1310) target = $region48
      $region47: #{tpu_custom_call.1} parent=5 // pred_region
        %s1313 = ssub.s32 %s13, 2
        // Predicated region
        $region49: #{tpu_custom_call.1} parent=47 // pred_check
          %p1314 = pneg %p171
        $region50: #{tpu_custom_call.1} parent=47 // pred_check_branch
          %1316 = sbr.rel (%p1314) target = $region52
        $region51: #{tpu_custom_call.1} parent=47 // pred_region
          %s1317 = sand.u32 %s156, 1
          %s1318 = scalar_lea.sflag [#allocation4], %s1317
          %s1319 = sand.u32 %s156, 1
          %s1320 = smul.addr %s1319, 256
          %s1321 = scalar_lea.vmem [#allocation3], %s1320
          %1322 = dma.done %s1318, 4096
        $region52: #{tpu_custom_call.1} parent=47 // pred_fallthru
          _
      $region48: #{tpu_custom_call.1} parent=5 // pred_fallthru
        _
    $region6: #{tpu_custom_call.1} parent=1 // loop_footer
      %s17 = sadd.s32 1, %s13
    $region7: #{tpu_custom_call.1} parent=1 // loop_footer_branch
      %12 = sbr.rel target = $region3
    $region8: #{tpu_custom_call.1} parent=1 // loop_exit
      _
    %1323 = vsyncpa [#allocation4], 1
    %s1324 = scalar_lea.sflag [#allocation4], 1
    %1325 = vsyncpa %s1324, 1

</llo_original>
